<compile_context>
chip_gen: v6e
topology: v6e:2x2x1
jax: 0.10.0
libtpu: 0.0.40
codegen_flags: <defaults>
</compile_context>

<pallas_src>
import functools

import jax
import jax.numpy as jnp
from jax.experimental import pallas as pl
from jax.experimental.pallas import tpu as pltpu


# ------------------------------ VMEM budgeting ------------------------------ #

def _vmem_limit_bytes():
    """Generation-aware scoped-VMEM limit (headroom below physical VMEM)."""
    try:
        cap = int(pltpu.get_tpu_info().vmem_capacity_bytes)
    except Exception:
        cap = 64 * 1024 * 1024  # conservative: v7x per-TensorCore VMEM
    return max(32 * 1024 * 1024, min(cap - 16 * 1024 * 1024, 100 * 1024 * 1024))


_VMEM_LIMIT = _vmem_limit_bytes()
_TILE_BUDGET = int(_VMEM_LIMIT * 0.8)  # what the tile pickers may plan against


def _divisor_tiles(dim, prefs):
    """Preferred tile sizes (descending) that evenly divide `dim`; fallback = full dim."""
    cands = [p for p in prefs if p <= dim and dim % p == 0]
    return cands if cands else [dim]


# --------------------------- tiled linear (matmul) -------------------------- #

def _linear_bias_kernel(x_ref, w_ref, b_ref, o_ref, acc_ref):
    # x: (tm, tk) bf16, w: (tk, tn) bf16, b: (1, tn) f32, o: (tm, tn).
    k = pl.program_id(2)

    @pl.when(k == 0)
    def _():
        acc_ref[...] = jnp.zeros_like(acc_ref)

    acc_ref[...] += jnp.dot(
        x_ref[...], w_ref[...], preferred_element_type=jnp.float32
    )

    @pl.when(k == pl.num_programs(2) - 1)
    def _():
        o_ref[...] = (acc_ref[...] + b_ref[...]).astype(o_ref.dtype)


def _linear_nobias_kernel(x_ref, w_ref, o_ref, acc_ref):
    k = pl.program_id(2)

    @pl.when(k == 0)
    def _():
        acc_ref[...] = jnp.zeros_like(acc_ref)

    acc_ref[...] += jnp.dot(
        x_ref[...], w_ref[...], preferred_element_type=jnp.float32
    )

    @pl.when(k == pl.num_programs(2) - 1)
    def _():
        o_ref[...] = acc_ref[...].astype(o_ref.dtype)


def _matmul_tiles(M, K, Nout, in_bytes, out_bytes, budget):
    tm_c = _divisor_tiles(M, (512, 256, 128, 64, 32, 16, 8))
    tn_c = _divisor_tiles(Nout, (512, 256, 128))
    tk_c = _divisor_tiles(K, (1024, 512, 256, 128))

    def fits(tm, tn, tk):
        usage = (2 * (tm * tk + tk * tn) * in_bytes   # double-buffered x, w
                 + 2 * tm * tn * out_bytes            # double-buffered out
                 + tm * tn * 4                        # f32 accumulator
                 + 2 * tn * 4)                        # bias
        return usage <= budget

    for tm in tm_c:
        for tn in tn_c:
            for tk in tk_c:
                if fits(tm, tn, tk):
                    return tm, tn, tk
    return tm_c[-1], tn_c[-1], tk_c[-1]


def _linear(x2d, w, b=None, out_dtype=None):
    """x2d: (M, K), w: (K, Nout), b: optional (Nout,) -> (M, Nout)."""
    M, K = x2d.shape
    Nout = w.shape[1]
    if out_dtype is None:
        out_dtype = x2d.dtype
    out_bytes = jnp.dtype(out_dtype).itemsize

    tm, tn, tk = _matmul_tiles(M, K, Nout, x2d.dtype.itemsize, out_bytes,
                               _TILE_BUDGET)
    grid = (M // tm, Nout // tn, K // tk)

    cost = pl.CostEstimate(
        flops=2 * M * K * Nout,
        transcendentals=0,
        bytes_accessed=((M * K + K * Nout) * x2d.dtype.itemsize
                        + M * Nout * out_bytes
                        + (Nout * 4 if b is not None else 0)),
    )
    common = dict(
        out_shape=jax.ShapeDtypeStruct((M, Nout), out_dtype),
        grid=grid,
        out_specs=pl.BlockSpec((tm, tn), lambda i, j, k: (i, j)),
        scratch_shapes=[pltpu.VMEM((tm, tn), jnp.float32)],
        compiler_params=pltpu.CompilerParams(
            dimension_semantics=("parallel", "parallel", "arbitrary"),
            vmem_limit_bytes=_VMEM_LIMIT,
        ),
        cost_estimate=cost,
    )
    x_spec = pl.BlockSpec((tm, tk), lambda i, j, k: (i, k))
    w_spec = pl.BlockSpec((tk, tn), lambda i, j, k: (k, j))

    if b is None:
        return pl.pallas_call(
            _linear_nobias_kernel, in_specs=[x_spec, w_spec], **common
        )(x2d, w)

    b2d = b.astype(jnp.float32).reshape(1, Nout)
    b_spec = pl.BlockSpec((1, tn), lambda i, j, k: (0, j))
    return pl.pallas_call(
        _linear_bias_kernel, in_specs=[x_spec, w_spec, b_spec], **common
    )(x2d, w, b2d)


# ----------------------- flash multi-head self-attention -------------------- #

def _flash_attn_kernel(q_ref, k_ref, v_ref, o_ref,
                       q_sc, m_sc, l_sc, acc_sc, *, scale):
    # q_ref: (tq, H, D); k_ref/v_ref: (tkv, H, D); o_ref: (tq, C) lane-dense.
    # scratch: q_sc (H, tq, D) compute dtype; m/l (H, tq, 1) f32; acc (H, tq, D) f32.
    kv = pl.program_id(2)

    @pl.when(kv == 0)
    def _():
        m_sc[...] = jnp.full_like(m_sc, -jnp.inf)
        l_sc[...] = jnp.zeros_like(l_sc)
        acc_sc[...] = jnp.zeros_like(acc_sc)
        # q is resident across the kv axis: relayout to head-major and fold the
        # softmax scale into it ONCE per q block (not per kv step / per score tile).
        q_hm = jnp.swapaxes(q_ref[...], 0, 1)                       # (H, tq, D)
        q_sc[...] = (q_hm.astype(jnp.float32) * scale).astype(q_sc.dtype)

    # k/v head-major views (per kv step); leading-batch dot_general kept for a
    # known-good Mosaic lowering (non-leading batch dims not adopted here).
    k = jnp.swapaxes(k_ref[...], 0, 1)                              # (H, tkv, D)
    v = jnp.swapaxes(v_ref[...], 0, 1)                              # (H, tkv, D)

    # scores (H, tq, tkv): heads batched on the MXU, contract D (no explicit k.T),
    # bf16 operands, f32 result. Scale already folded into q.
    s = jax.lax.dot_general(
        q_sc[...], k, (((2,), (2,)), ((0,), (0,))),
        preferred_element_type=jnp.float32,
    )

    # online (numerically stable) softmax update, f32 statistics
    m_prev = m_sc[...]
    m_new = jnp.maximum(m_prev, jnp.max(s, axis=-1, keepdims=True))
    alpha = jnp.exp(m_prev - m_new)
    p = jnp.exp(s - m_new)
    l_sc[...] = alpha * l_sc[...] + jnp.sum(p, axis=-1, keepdims=True)

    pv = jax.lax.dot_general(
        p.astype(v.dtype), v, (((2,), (1,)), ((0,), (0,))),
        preferred_element_type=jnp.float32,
    )                                                               # (H, tq, D) f32
    acc_sc[...] = alpha * acc_sc[...] + pv
    m_sc[...] = m_new

    @pl.when(kv == pl.num_programs(2) - 1)
    def _():
        inv_l = pl.reciprocal(l_sc[...], approx=False)   # exact; off the hot loop
        o = acc_sc[...] * inv_l                          # (H, tq, D) f32
        # lane-dense head merge: (H, tq, D) -> (tq, H*D) = (tq, C) before store.
        o_ref[...] = (
            jnp.swapaxes(o, 0, 1).reshape(o_ref.shape).astype(o_ref.dtype)
        )


_TQ_PREFS = (256, 128, 64, 32, 16, 8)
_TKV_PREFS = (1024, 512, 256, 128, 64, 32, 16, 8)


def _attn_tiles(N, H, D, C, dbytes, budget):
    tq_c = _divisor_tiles(N, _TQ_PREFS)
    tkv_c = _divisor_tiles(N, _TKV_PREFS)

    def fits(tq, tkv):
        usage = (2 * tq * H * D * dbytes        # double-buffered q block
                 + 4 * tkv * H * D * dbytes     # double-buffered k + v blocks
                 + 2 * tq * C * dbytes          # double-buffered out block
                 + 2 * H * tq * 4               # m, l stats (f32)
                 + H * tq * D * 4               # f32 accumulator
                 + H * tq * D * dbytes)         # head-major, pre-scaled q scratch
        return usage <= budget

    for tq in tq_c:            # prefer large tq (halves K/V HBM re-reads)
        for tkv in tkv_c:      # then the largest kv block that fits
            if fits(tq, tkv):
                return tq, tkv
    return tq_c[-1], tkv_c[-1]


def _flash_mhsa(qkv5, scale):
    """qkv5: (B, N, 3, H, D) -> attention output (B, N, C) with C = H*D."""
    B, N, _three, H, D = qkv5.shape
    C = H * D
    dbytes = qkv5.dtype.itemsize
    tq, tkv = _attn_tiles(N, H, D, C, dbytes, _TILE_BUDGET)
    nq, nkv = N // tq, N // tkv
    grid = (B, nq, nkv)

    q_spec = pl.BlockSpec(
        (pl.Squeezed(), tq, pl.Squeezed(), H, D),
        lambda b, qi, kv: (b, qi, 0, 0, 0),
    )
    k_spec = pl.BlockSpec(
        (pl.Squeezed(), tkv, pl.Squeezed(), H, D),
        lambda b, qi, kv: (b, kv, 1, 0, 0),
    )
    v_spec = pl.BlockSpec(
        (pl.Squeezed(), tkv, pl.Squeezed(), H, D),
        lambda b, qi, kv: (b, kv, 2, 0, 0),
    )
    o_spec = pl.BlockSpec(
        (pl.Squeezed(), tq, C),
        lambda b, qi, kv: (b, qi, 0),
    )

    qkv_bytes = B * N * H * D * dbytes
    cost = pl.CostEstimate(
        flops=4 * B * H * N * N * D,
        transcendentals=B * H * N * N,
        # q read once per (b, qi); k and v each re-read nq times; out written once.
        bytes_accessed=qkv_bytes * (1 + 2 * nq) + B * N * C * dbytes,
    )

    kernel = functools.partial(_flash_attn_kernel, scale=scale)
    return pl.pallas_call(
        kernel,
        out_shape=jax.ShapeDtypeStruct((B, N, C), qkv5.dtype),
        grid=grid,
        in_specs=[q_spec, k_spec, v_spec],
        out_specs=o_spec,
        scratch_shapes=[
            pltpu.VMEM((H, tq, D), qkv5.dtype),    # head-major, pre-scaled q
            pltpu.VMEM((H, tq, 1), jnp.float32),   # running max m
            pltpu.VMEM((H, tq, 1), jnp.float32),   # running denom l
            pltpu.VMEM((H, tq, D), jnp.float32),   # running numerator acc
        ],
        compiler_params=pltpu.CompilerParams(
            dimension_semantics=("parallel", "parallel", "arbitrary"),
            vmem_limit_bytes=_VMEM_LIMIT,
        ),
        cost_estimate=cost,
    )(qkv5, qkv5, qkv5)


# --------------------------------- module ----------------------------------- #

class AttentionPallas:
    """JAX/Pallas equivalent of the PyTorch Attention module (qkv_bias=False)."""

    def __init__(self, dim, num_heads=8, key=jax.random.PRNGKey(0),
                 compute_dtype=jnp.bfloat16):
        assert dim % num_heads == 0
        self.dim = dim
        self.num_heads = num_heads
        self.head_dim = dim // num_heads
        self.scale = self.head_dim ** (-0.5)
        self.compute_dtype = compute_dtype

        k1, k2, k3 = jax.random.split(key, 3)
        bound = 1.0 / (dim ** 0.5)
        # weights stored transposed vs torch ((in, out)) and in bf16: the MXU is
        # bf16-native on v5e/v6e/v7x, and bf16 halves the projection HBM traffic.
        self.w_qkv = jax.random.uniform(
            k1, (dim, 3 * dim), jnp.float32, -bound, bound).astype(compute_dtype)
        self.w_proj = jax.random.uniform(
            k2, (dim, dim), jnp.float32, -bound, bound).astype(compute_dtype)
        self.b_proj = jax.random.uniform(k3, (dim,), jnp.float32, -bound, bound)
        # TODO(synk): attn_drop / proj_drop are nn.Dropout(p=0.0) -> identity; omitted.

    def __call__(self, x):
        B, N, C = x.shape
        H, D = self.num_heads, self.head_dim
        in_dtype = x.dtype

        xc = x.reshape(B * N, C).astype(self.compute_dtype)

        # --- qkv projection (tiled Pallas matmul, bf16 MXU / f32 accumulate) ---
        qkv = _linear(xc, self.w_qkv)                    # (B*N, 3C) bf16
        qkv5 = qkv.reshape(B, N, 3, H, D)                # pure reshape, no transpose

        # --- flash attention: q/k/v sliced out of qkv5 by BlockSpec index maps;
        #     output already head-merged to (B, N, C), lane-dense ---
        o = _flash_mhsa(qkv5, self.scale)                # (B, N, C) bf16

        # --- output projection (tiled Pallas matmul + bias), back to x dtype ---
        out = _linear(o.reshape(B * N, C), self.w_proj, self.b_proj,
                      out_dtype=in_dtype)                # (B*N, C)
        return out.reshape(B, N, C)


# ------------------------------- reference ---------------------------------- #

def _reference(x, attn: AttentionPallas):
    B, N, C = x.shape
    H, D = attn.num_heads, attn.head_dim
    w_qkv = attn.w_qkv.astype(jnp.float32)
    w_proj = attn.w_proj.astype(jnp.float32)
    qkv = (x.reshape(B * N, C) @ w_qkv).reshape(B, N, 3, H, D)
    qkv = qkv.transpose(2, 0, 3, 1, 4)
    q, k, v = qkv[0], qkv[1], qkv[2]
    s = jnp.einsum("bhnd,bhmd->bhnm", q, k) * attn.scale
    p = jax.nn.softmax(s, axis=-1)
    o = jnp.einsum("bhnm,bhmd->bhnd", p, v)
    o = o.transpose(0, 2, 1, 3).reshape(B * N, C)
    return (o @ w_proj + attn.b_proj).reshape(B, N, C)


# ---------------------------------- main ------------------------------------ #

if __name__ == "__main__":
    key = jax.random.PRNGKey(0)
    kx, kp = jax.random.split(key)

    B, N, C, H = 2, 8, 32, 8          # small shapes: batch=2, seq=8, dim=32, heads=8
    x = jax.random.normal(kx, (B, N, C), jnp.float32)

    attn = AttentionPallas(dim=C, num_heads=H, key=kp)

    out = jax.block_until_ready(attn(x))
    assert out.shape == (B, N, C)
    assert out.dtype == x.dtype

    ref = _reference(x, attn)
    max_err = float(jnp.max(jnp.abs(out - ref)))
    # bf16 MXU operands (f32 accumulation): allow bf16-level rounding vs f32 ref.
    assert jnp.allclose(out, ref, atol=5e-2, rtol=5e-2), (
        f"mismatch vs reference (max abs err {max_err})"
    )

    print("KERNEL_OK")
</pallas_src>

<mosaic_0001>
module attributes {stable_mosaic.version = 11 : i64} {
  func.func @_linear_nobias_kernel(%arg0: i32, %arg1: i32, %arg2: i32, %arg3: memref<16x32xbf16, #tpu.memory_space<vmem>>, %arg4: memref<32x96xbf16, #tpu.memory_space<vmem>>, %arg5: memref<16x96xbf16, #tpu.memory_space<vmem>>, %arg6: memref<16x96xf32, #tpu.memory_space<vmem>>) attributes {dimension_semantics = [#tpu.dimension_semantics<parallel>, #tpu.dimension_semantics<parallel>, #tpu.dimension_semantics<arbitrary>], iteration_bounds = array<i64: 1, 1, 1>, scalar_prefetch = 0 : i64, scratch_operands = 1 : i64, tpu.core_type = #tpu.core_type<tc>, window_params = [{transform_indices = @transform_0, window_bounds = array<i64: 16, 32>}, {transform_indices = @transform_1, window_bounds = array<i64: 32, 96>}, {transform_indices = @transform_2, window_bounds = array<i64: 16, 96>}]} {
    %c0_i32 = arith.constant 0 : i32
    %0 = arith.cmpi eq, %arg2, %c0_i32 : i32
    %1 = arith.extui %0 : i1 to i32
    %c0_i32_0 = arith.constant 0 : i32
    %2 = arith.cmpi ne, %1, %c0_i32_0 : i32
    scf.if %2 {
      %cst_10 = arith.constant 0.000000e+00 : f32
      %12 = vector.broadcast %cst_10 : f32 to vector<16x96xf32>
      %c0_11 = arith.constant 0 : index
      %c0_12 = arith.constant 0 : index
      %13 = vector.load %arg6[%c0_11, %c0_12] : memref<16x96xf32, #tpu.memory_space<vmem>>, vector<16x96xf32>
      tpu.vector_store %arg6[%c0_11, %c0_12], %12 {strides = array<i32>} : memref<16x96xf32, #tpu.memory_space<vmem>>, vector<16x96xf32>,
    } else {
    }
    %c0 = arith.constant 0 : index
    %c0_1 = arith.constant 0 : index
    %3 = vector.load %arg6[%c0, %c0_1] : memref<16x96xf32, #tpu.memory_space<vmem>>, vector<16x96xf32>
    %c0_2 = arith.constant 0 : index
    %c0_3 = arith.constant 0 : index
    %4 = vector.load %arg3[%c0_2, %c0_3] : memref<16x32xbf16, #tpu.memory_space<vmem>>, vector<16x32xbf16>
    %c0_4 = arith.constant 0 : index
    %c0_5 = arith.constant 0 : index
    %5 = vector.load %arg4[%c0_4, %c0_5] : memref<32x96xbf16, #tpu.memory_space<vmem>>, vector<32x96xbf16>
    %cst = arith.constant dense<0.000000e+00> : vector<16x96xf32>
    %6 = tpu.matmul %4, %5, %cst {dimension_numbers = #tpu.dot_dimension_numbers<[1], [0], [0], [1], [0, 0, 1, 1], [], []>} : vector<16x32xbf16>, vector<32x96xbf16>, vector<16x96xf32> -> vector<16x96xf32>
    %7 = arith.addf %3, %6 : vector<16x96xf32>
    %c0_6 = arith.constant 0 : index
    %c0_7 = arith.constant 0 : index
    %8 = vector.load %arg6[%c0_6, %c0_7] : memref<16x96xf32, #tpu.memory_space<vmem>>, vector<16x96xf32>
    tpu.vector_store %arg6[%c0_6, %c0_7], %7 {strides = array<i32>} : memref<16x96xf32, #tpu.memory_space<vmem>>, vector<16x96xf32>,
    %c0_i32_8 = arith.constant 0 : i32
    %9 = arith.cmpi eq, %arg2, %c0_i32_8 : i32
    %10 = arith.extui %9 : i1 to i32
    %c0_i32_9 = arith.constant 0 : i32
    %11 = arith.cmpi ne, %10, %c0_i32_9 : i32
    scf.if %11 {
      %c0_10 = arith.constant 0 : index
      %c0_11 = arith.constant 0 : index
      %12 = vector.load %arg6[%c0_10, %c0_11] : memref<16x96xf32, #tpu.memory_space<vmem>>, vector<16x96xf32>
      %13 = arith.truncf %12 : vector<16x96xf32> to vector<16x96xbf16>
      %c0_12 = arith.constant 0 : index
      %c0_13 = arith.constant 0 : index
      %14 = vector.load %arg5[%c0_12, %c0_13] : memref<16x96xbf16, #tpu.memory_space<vmem>>, vector<16x96xbf16>
      tpu.vector_store %arg5[%c0_12, %c0_13], %13 {strides = array<i32>} : memref<16x96xbf16, #tpu.memory_space<vmem>>, vector<16x96xbf16>,
    } else {
    }
    return
  }
  func.func @transform_0(%arg0: i32, %arg1: i32, %arg2: i32) -> (i32, i32) {
    %c0_i32 = arith.constant 0 : i32
    return %arg0, %arg2 : i32, i32
  }
  func.func @transform_1(%arg0: i32, %arg1: i32, %arg2: i32) -> (i32, i32) {
    %c0_i32 = arith.constant 0 : i32
    return %arg2, %arg1 : i32, i32
  }
  func.func @transform_2(%arg0: i32, %arg1: i32, %arg2: i32) -> (i32, i32) {
    %c0_i32 = arith.constant 0 : i32
    return %arg0, %arg1 : i32, i32
  }
}

</mosaic_0001>

<llo_original>
// kernel: tpu_custom_call.1
$region0: #{tpu_custom_call.1}
  #allocation0 [shape = 'u32[]', space=smem, size = 0x4, offset = 0x4, fixed_abs, tag = 'smem constant byte address 0x4 - core index']
  #allocation1 [shape = 'u32[144,128]{1,0:T(1,128)}', space=vmem, size = 0x12000, scoped, tag = 'internal scratch']
  #allocation2 [shape = 'f32[16,96]{1,0:T(8,128)}', space=vmem, size = 0x2000, scoped, tag = 'scratch operand']
  %s0 = inlined_call_operand.hbm [shape: bf16[16,32], index: 0, kind: input, shape index: {}]
  %s1 = inlined_call_operand.hbm [shape: bf16[32,96], index: 1, kind: input, shape index: {}]
  %s2 = inlined_call_operand.hbm [shape: bf16[16,96], index: 2, kind: output, shape index: {}]
  %s3 = sld [smem:[#allocation0]]
  $region34: #{tpu_custom_call.1} parent=0
    _
  %s5 = ssub.s32 1, %s3
  %s6 = scalar_select 0, %s5, %s3
  $region1: #{tpu_custom_call.1} parent=0
    #allocation3 [shape = 'u8[4096]{0}', space=vmem, size = 0x1000, scoped, tag = 'input window, operand 0, single buffered']
    #allocation4 [shape = 's32[1]{0}', space=sflag, size = 0x4, scoped, tag = 'scoped memory for tpu_custom_call.1']
    #allocation5 [shape = 's32[1]{0}', space=sflag, size = 0x4, scoped, tag = 'scoped memory for tpu_custom_call.1']
    #allocation6 [shape = 'u8[8192]{0}', space=vmem, size = 0x2000, scoped, tag = 'input window, operand 1, single buffered']
    #allocation7 [shape = 's32[1]{0}', space=sflag, size = 0x4, scoped, tag = 'scoped memory for tpu_custom_call.1']
    #allocation8 [shape = 'u8[4096]{0}', space=vmem, size = 0x1000, scoped, tag = 'output window, operand 0, single buffered']
    %7 = vsyncpa [#allocation4], 0
    %8 = vsyncpa [#allocation7], 0
    %9 = vsyncpa [#allocation5], 0
    // Predicated region
    $region2: #{tpu_custom_call.1} parent=1 // pred_check
      _
    $region3: #{tpu_custom_call.1} parent=1 // pred_check_branch
      %11 = sbr.rel (0) target = $region5
    $region4: #{tpu_custom_call.1} parent=1 // pred_region
      %s13 = ssub.s32 128, 128
      %14 = vsyncadd [#allocation4], %s13
      %s15 = sshll.u32 [#allocation3], 4
      %s16 = int_to_ptr.vmem [resolvable:$true] %s15
      %21 = dma.hbm_to_vmem [thread:$0]  %s0, 128, %s16, [#allocation4], 64, 64, 4
    $region5: #{tpu_custom_call.1} parent=1 // pred_fallthru
      _
    // Predicated region
    $region6: #{tpu_custom_call.1} parent=1 // pred_check
      _
    $region7: #{tpu_custom_call.1} parent=1 // pred_check_branch
      %23 = sbr.rel (0) target = $region9
    $region8: #{tpu_custom_call.1} parent=1 // pred_region
      %s25 = ssub.s32 256, 256
      %26 = vsyncadd [#allocation7], %s25
      %s27 = sshll.u32 [#allocation6], 4
      %s28 = int_to_ptr.vmem [resolvable:$true] %s27
      %33 = dma.hbm_to_vmem [thread:$0]  %s1, 256, %s28, [#allocation7], 64, 64, 4
    $region9: #{tpu_custom_call.1} parent=1 // pred_fallthru
      _
    // Predicated region
    $region10: #{tpu_custom_call.1} parent=1 // pred_check
      _
    $region11: #{tpu_custom_call.1} parent=1 // pred_check_branch
      %35 = sbr.rel (0) target = $region13
    $region12: #{tpu_custom_call.1} parent=1 // pred_region
      %36 = dma.done [#allocation4], 128
    $region13: #{tpu_custom_call.1} parent=1 // pred_fallthru
      _
    // Predicated region
    $region14: #{tpu_custom_call.1} parent=1 // pred_check
      _
    $region15: #{tpu_custom_call.1} parent=1 // pred_check_branch
      %38 = sbr.rel (0) target = $region17
    $region16: #{tpu_custom_call.1} parent=1 // pred_region
      %39 = dma.done [#allocation7], 256
    $region17: #{tpu_custom_call.1} parent=1 // pred_fallthru
      _
    %p41 = scmp.eq.s32.totalorder 0, 0
    // Predicated region
    $region18: #{tpu_custom_call.1} parent=1 // pred_check
      %p42 = pneg %p41
    $region19: #{tpu_custom_call.1} parent=1 // pred_check_branch
      %44 = sbr.rel (%p42) target = $region21
    $region20: #{tpu_custom_call.1} parent=1 // pred_region
      %vm45 = vcmask 785408
      %46 = vst.msk [vmem:[#allocation2] sm:$0xff] %vm45, 0.0
      %47 = vst.msk [vmem:[#allocation2 + $0x8] sm:$0xff] %vm45, 0.0
    $region21: #{tpu_custom_call.1} parent=1 // pred_fallthru
      _
    %v48 = vld [vmem:[#allocation2] sm:$0xff]
    %v49 = vld [vmem:[#allocation2 + $0x8] sm:$0xff]
    %v50 = vld [vmem:[#allocation3] sm:$0xf]
    %v51 = vld [vmem:[#allocation3 + $0x4] sm:$0xf]
    %v52 = vld [vmem:[#allocation6] sm:$0xf]
    %v53 = vld [vmem:[#allocation6 + $0x4] sm:$0xf]
    %v54 = vld [vmem:[#allocation6 + $0x8] sm:$0xf]
    %v55 = vld [vmem:[#allocation6 + $0xc] sm:$0xf]
    %v58 = vunpack.c.l.b16 %v50
    %v59 = vunpack.c.l.b16 %v51
    %v60 = vpack.c.b16 %v59, %v58
    %v65 = vunpack.c.l.b16 %v52
    %v66 = vunpack.c.l.b16 %v53
    %v67 = vunpack.c.l.b16 %v54
    %v68 = vunpack.c.l.b16 %v55
    %v69 = vpack.c.b16 %v66, %v65
    %v70 = vpack.c.b16 %v68, %v67
    %vm73 = vcmask 261120
    %v75 = vsel %vm73, %v60, 0
    %77 = vmatprep.subr.bf16.mxu0 0
    %78 = vmatpush1.bf16.msra.mxu0 0
    %79 = vmatprep.subr.bf16.mxu0 0
    %80 = vmatpush1.bf16.msra.mxu0 0
    %81 = vmatprep.subr.bf16.mxu0 0
    %82 = vmatpush1.bf16.msra.mxu0 0
    %83 = vmatprep.subr.bf16.mxu0 0
    %84 = vmatpush1.bf16.msra.mxu0 0
    %85 = vmatprep.subr.bf16.mxu0 0
    %86 = vmatpush1.bf16.msra.mxu0 0
    %87 = vmatprep.subr.bf16.mxu0 0
    %88 = vmatpush1.bf16.msra.mxu0 0
    %89 = vmatprep.subr.bf16.mxu0 0
    %90 = vmatpush1.bf16.msra.mxu0 %v70
    %91 = vmatprep.subr.bf16.mxu0 0
    %92 = vmatpush1.bf16.msra.mxu0 %v69
    %93 = vmatprep.subr.bf16.mxu0 0
    %94 = vmatpush2.bf16.msra.mxu0 0
    %95 = vmatprep.subr.bf16.mxu0 0
    %96 = vmatpush2.bf16.msra.mxu0 0
    %97 = vmatprep.subr.bf16.mxu0 0
    %98 = vmatpush2.bf16.msra.mxu0 0
    %99 = vmatprep.subr.bf16.mxu0 0
    %100 = vmatpush2.bf16.msra.mxu0 0
    %101 = vmatprep.subr.bf16.mxu0 0
    %102 = vmatpush2.bf16.msra.mxu0 0
    %103 = vmatprep.subr.bf16.mxu0 0
    %104 = vmatpush2.bf16.msra.mxu0 0
    %105 = vmatprep.subr.bf16.mxu0 0
    %106 = vmatpush2.bf16.msra.mxu0 0
    %107 = vmatprep.subr.bf16.mxu0 0
    %108 = vmatpush2.bf16.msra.mxu0 0
    %109 = vmatprep.mubr.bf16.mxu0 0
    %110 = vmatmul.mubr.bf16.gmra.mxu0 %v75
    %v111 = vpop.f32.mrf.mxu0
    %v112 = vadd.f32 0.0, %v111
    %v113 = vpop.f32.mrf.mxu0
    %v114 = vpop.f32.mrf.mxu0
    %v115 = vadd.f32 0.0, %v114
    %v116 = vpop.f32.mrf.mxu0
    %117 = vdwg.mxu0
    %v118 = vadd.f32 %v48, %v112
    %v119 = vadd.f32 %v49, %v115
    %vm120 = vcmask 785408
    %121 = vst.msk [vmem:[#allocation2] sm:$0xff] %vm120, %v118
    %122 = vst.msk [vmem:[#allocation2 + $0x8] sm:$0xff] %vm120, %v119
    // Predicated region
    $region22: #{tpu_custom_call.1} parent=1 // pred_check
      %p123 = pneg %p41
    $region23: #{tpu_custom_call.1} parent=1 // pred_check_branch
      %125 = sbr.rel (%p123) target = $region25
    $region24: #{tpu_custom_call.1} parent=1 // pred_region
      %v126 = vld [vmem:[#allocation2] sm:$0xff]
      %v127 = vld [vmem:[#allocation2 + $0x8] sm:$0xff]
      %v128 = vpack.c.bf16 %v127, %v126
      %v130 = vunpack.c.l.b16 %v128
      %v131 = vunpack.c.h.b16 %v128
      %v132 = vpack.c.b16 %v130, %v130
      %v133 = vpack.c.b16 %v131, %v131
      %vm136 = vcmask 781312
      %137 = vst.msk [vmem:[#allocation8] sm:$0xf] %vm136, %v132
      %138 = vst.msk [vmem:[#allocation8 + $0x4] sm:$0xf] %vm136, %v133
    $region25: #{tpu_custom_call.1} parent=1 // pred_fallthru
      _
    // Predicated region
    $region26: #{tpu_custom_call.1} parent=1 // pred_check
      _
    $region27: #{tpu_custom_call.1} parent=1 // pred_check_branch
      %140 = sbr.rel (0) target = $region29
    $region28: #{tpu_custom_call.1} parent=1 // pred_region
      %s142 = ssub.s32 128, 128
      %143 = vsyncadd [#allocation5], %s142
      %s144 = sshll.u32 [#allocation8], 4
      %s145 = int_to_ptr.vmem [resolvable:$true] %s144
      %150 = dma.vmem_to_hbm [thread:$0]  %s145, 128, %s2, [#allocation5], 64, 64, 4
    $region29: #{tpu_custom_call.1} parent=1 // pred_fallthru
      _
    // Predicated region
    $region30: #{tpu_custom_call.1} parent=1 // pred_check
      _
    $region31: #{tpu_custom_call.1} parent=1 // pred_check_branch
      %152 = sbr.rel (0) target = $region33
    $region32: #{tpu_custom_call.1} parent=1 // pred_region
      %153 = dma.done [#allocation5], 128
    $region33: #{tpu_custom_call.1} parent=1 // pred_fallthru
      _
    %154 = vsyncpa [#allocation4], 1
    %155 = vsyncpa [#allocation7], 1
    %156 = vsyncpa [#allocation5], 1

</llo_original>
